<compile_context>
chip_gen: v7x
topology: tpu7x:2x2x1
jax: 0.10.0
libtpu: 0.0.40
codegen_flags: <defaults>
</compile_context>

<pallas_src>
import functools
import math

import jax
import jax.numpy as jnp
from jax import lax
from jax.experimental import pallas as pl
from jax.experimental.pallas import tpu as pltpu

_LANES = 128


def _round_up(a: int, b: int) -> int:
    return (a + b - 1) // b * b


def _mix32(h):
    """splitmix32 / Wellons finalizer on uint32 values (good avalanche)."""
    h = h ^ (h >> jnp.uint32(16))
    h = h * jnp.uint32(0x7FEB352D)
    h = h ^ (h >> jnp.uint32(15))
    h = h * jnp.uint32(0x846CA68B)
    h = h ^ (h >> jnp.uint32(16))
    return h


def _pos_enc_dropout_kernel(seed_ref, x_ref, pe_ref, o_ref, *,
                            keep_threshold, inv_keep, block_rows, lanes):
    # x_ref / pe_ref / o_ref: (block_rows, 128) lane-dense tiles in VMEM.
    # seed_ref: (1,) int32 in SMEM.
    y = x_ref[...].astype(jnp.float32) + pe_ref[...].astype(jnp.float32)

    if keep_threshold > 0:  # static: dropout_p > 0 (training-mode dropout)
        tile = pl.program_id(0)
        row = lax.broadcasted_iota(jnp.int32, y.shape, 0)
        lane = lax.broadcasted_iota(jnp.int32, y.shape, 1)
        # Global element id -> per-tile-independent, reproducible randoms.
        gidx = (tile * block_rows + row) * lanes + lane
        seed_u = seed_ref[0].astype(jnp.uint32)
        h = gidx.astype(jnp.uint32) + (seed_u + jnp.uint32(1)) * jnp.uint32(0x9E3779B9)
        h = _mix32(h)
        # Top 31 bits -> non-negative int32 uniform in [0, 2^31); pure integer
        # threshold compare (no float convert, no arithmetic-shift hazard).
        r = (h >> jnp.uint32(1)).astype(jnp.int32)
        keep = r >= jnp.int32(keep_threshold)
        y = jnp.where(keep, y * inv_keep, 0.0)

    o_ref[...] = y.astype(o_ref.dtype)


def make_positional_encoding_buffer(d_model: int, max_len: int = 20):
    """Deterministic pe buffer, identical to the PyTorch __init__."""
    position = jnp.arange(max_len, dtype=jnp.float32)[:, None]          # (L, 1)
    div_term = jnp.exp(
        jnp.arange(0, d_model, 2, dtype=jnp.float32)
        * (-math.log(10000.0) / d_model)
    )                                                                    # (D/2,)
    angles = position * div_term                                         # (L, D/2)
    pe = jnp.zeros((max_len, 1, d_model), dtype=jnp.float32)
    pe = pe.at[:, 0, 0::2].set(jnp.sin(angles))
    pe = pe.at[:, 0, 1::2].set(jnp.cos(angles))
    return pe


def positional_encoding_forward(x, pe, *, dropout_p: float = 0.1, seed: int = 0,
                                block_rows: int = 1024):
    """x: (seq_len, batch, d_model). Returns same shape/dtype.

    Equivalent to: dropout(x + pe[:seq_len], p=dropout_p) with inverted
    (training-mode) dropout scaling.
    """
    S, B, D = x.shape
    assert pe.shape[0] >= S and pe.shape[2] == D
    p = float(dropout_p)
    if not (0.0 <= p < 1.0):
        raise ValueError("dropout_p must be in [0, 1)")

    n = S * B * D
    # pe is tiny (max_len * B * D); materialize the batch broadcast in the
    # wrapper so the kernel stays a pure per-lane VPU add.
    pe_slab = jnp.broadcast_to(pe[:S].astype(x.dtype), (S, B, D))

    # Lane-dense 2-D slab layout: (rows, 128), padded so the grid tiles evenly.
    rows = pl.cdiv(n, _LANES)
    block_rows = min(block_rows, _round_up(rows, 8))
    padded_rows = _round_up(rows, block_rows)
    n_pad = padded_rows * _LANES

    x_flat = jnp.pad(x.reshape(-1), (0, n_pad - n)).reshape(padded_rows, _LANES)
    pe_flat = jnp.pad(pe_slab.reshape(-1), (0, n_pad - n)).reshape(padded_rows, _LANES)
    seed_arr = jnp.asarray([seed], dtype=jnp.int32)

    keep_threshold = min(int(round(p * float(1 << 31))), (1 << 31) - 1) if p > 0.0 else 0
    inv_keep = 1.0 / (1.0 - p) if p > 0.0 else 1.0

    kernel = functools.partial(
        _pos_enc_dropout_kernel,
        keep_threshold=keep_threshold,
        inv_keep=inv_keep,
        block_rows=block_rows,
        lanes=_LANES,
    )

    grid = (padded_rows // block_rows,)
    out = pl.pallas_call(
        kernel,
        out_shape=jax.ShapeDtypeStruct((padded_rows, _LANES), x.dtype),
        grid=grid,
        in_specs=[
            pl.BlockSpec(memory_space=pltpu.MemorySpace.SMEM),          # seed
            pl.BlockSpec((block_rows, _LANES), lambda i: (i, 0)),       # x slab
            pl.BlockSpec((block_rows, _LANES), lambda i: (i, 0)),       # pe slab
        ],
        out_specs=pl.BlockSpec((block_rows, _LANES), lambda i: (i, 0)),
        compiler_params=pltpu.CompilerParams(
            dimension_semantics=("parallel",),
        ),
    )(seed_arr, x_flat, pe_flat)

    return out.reshape(-1)[:n].reshape(S, B, D)


if __name__ == "__main__":
    d_model = 32
    max_len = 20
    seq_len = 8
    batch = 2
    dropout_p = 0.1

    key = jax.random.PRNGKey(0)
    x = jax.random.normal(key, (seq_len, batch, d_model), dtype=jnp.float32)
    pe = make_positional_encoding_buffer(d_model, max_len)

    # Deterministic (no-dropout) reference.
    ref = x + pe[:seq_len]

    # 1) p = 0: kernel must reproduce the reference exactly (eval-mode path).
    out_nodrop = jax.block_until_ready(
        positional_encoding_forward(x, pe, dropout_p=0.0, seed=0))
    assert out_nodrop.shape == (seq_len, batch, d_model)
    assert bool(jnp.allclose(out_nodrop, ref, atol=1e-6, rtol=1e-6)), \
        "no-dropout output mismatch"

    # 2) p = 0.1: every kept element equals ref/(1-p); keep-rate near (1-p).
    out = jax.block_until_ready(
        positional_encoding_forward(x, pe, dropout_p=dropout_p, seed=123))
    assert out.shape == (seq_len, batch, d_model)
    nz = out != 0.0
    assert bool(jnp.allclose(
        jnp.where(nz, out, 0.0),
        jnp.where(nz, ref / (1.0 - dropout_p), 0.0),
        atol=1e-5, rtol=1e-5)), "dropout-scaled output mismatch"
    keep_rate = float(jnp.mean(nz.astype(jnp.float32)))
    assert 0.75 < keep_rate <= 1.0, f"dropout keep rate looks wrong: {keep_rate}"

    print("KERNEL_OK")
</pallas_src>

<mosaic_0001>
module attributes {stable_mosaic.version = 11 : i64} {
  func.func @_pos_enc_dropout_kernel(%arg0: i32, %arg1: memref<1xi32, #tpu.memory_space<smem>>, %arg2: memref<8x128xf32, #tpu.memory_space<vmem>>, %arg3: memref<8x128xf32, #tpu.memory_space<vmem>>, %arg4: memref<8x128xf32, #tpu.memory_space<vmem>>) attributes {dimension_semantics = [#tpu.dimension_semantics<parallel>], iteration_bounds = array<i64: 1>, scalar_prefetch = 0 : i64, scratch_operands = 0 : i64, tpu.core_type = #tpu.core_type<tc>, window_params = [{transform_indices = @transform_0, window_bounds = array<i64: 1>}, {transform_indices = @transform_1, window_bounds = array<i64: 8, 128>}, {transform_indices = @transform_2, window_bounds = array<i64: 8, 128>}, {transform_indices = @transform_3, window_bounds = array<i64: 8, 128>}]} {
    %c0 = arith.constant 0 : index
    %c0_0 = arith.constant 0 : index
    %0 = vector.load %arg2[%c0, %c0_0] : memref<8x128xf32, #tpu.memory_space<vmem>>, vector<8x128xf32>
    %c0_1 = arith.constant 0 : index
    %c0_2 = arith.constant 0 : index
    %1 = vector.load %arg3[%c0_1, %c0_2] : memref<8x128xf32, #tpu.memory_space<vmem>>, vector<8x128xf32>
    %2 = arith.addf %0, %1 : vector<8x128xf32>
    %c0_3 = arith.constant 0 : index
    %c0_4 = arith.constant 0 : index
    %3 = vector.load %arg4[%c0_3, %c0_4] : memref<8x128xf32, #tpu.memory_space<vmem>>, vector<8x128xf32>
    tpu.vector_store %arg4[%c0_3, %c0_4], %2 {strides = array<i32>} : memref<8x128xf32, #tpu.memory_space<vmem>>, vector<8x128xf32>,
    return
  }
  func.func @transform_0(%arg0: i32) -> i32 {
    %c0_i32 = arith.constant 0 : i32
    %c0_i32_0 = arith.constant 0 : i32
    return %c0_i32 : i32
  }
  func.func @transform_1(%arg0: i32) -> (i32, i32) {
    %c0_i32 = arith.constant 0 : i32
    %c0_i32_0 = arith.constant 0 : i32
    return %arg0, %c0_i32 : i32, i32
  }
  func.func @transform_2(%arg0: i32) -> (i32, i32) {
    %c0_i32 = arith.constant 0 : i32
    %c0_i32_0 = arith.constant 0 : i32
    return %arg0, %c0_i32 : i32, i32
  }
  func.func @transform_3(%arg0: i32) -> (i32, i32) {
    %c0_i32 = arith.constant 0 : i32
    %c0_i32_0 = arith.constant 0 : i32
    return %arg0, %c0_i32 : i32, i32
  }
}

</mosaic_0001>

<llo_original>
// kernel: tpu_custom_call.1
$region0: #{tpu_custom_call.1}
  #allocation0 [shape = 'u32[]', space=smem, size = 0x4, offset = 0x4, fixed_abs, tag = 'smem constant byte address 0x4 - core index']
  #allocation1 [shape = 'u32[144,128]{1,0:T(1,128)}', space=vmem, size = 0x12000, scoped, tag = 'internal scratch']
  #allocation2 [shape = 's32[1]{0:T(128)S(6)}', space=smem, size = 0x200, scoped, tag = 'scoped memory for tpu_custom_call.1']
  %s0 = inlined_call_operand.<no memory space> [shape: s32[1], index: 0, kind: input, shape index: {}]
  %s1 = inlined_call_operand.hbm [shape: f32[8,128], index: 1, kind: input, shape index: {}]
  %s2 = inlined_call_operand.hbm [shape: f32[8,128], index: 2, kind: input, shape index: {}]
  %s3 = inlined_call_operand.hbm [shape: f32[8,128], index: 3, kind: output, shape index: {}]
  %s4 = sld [smem:[#allocation0]]
  $region30: #{tpu_custom_call.1} parent=0
    _
  %s6 = ssub.s32 1, %s4
  %s7 = scalar_select 0, %s6, %s4
  %8 = sst [smem:[#allocation2]] %s0
  $region1: #{tpu_custom_call.1} parent=0
    #allocation3 [shape = 'u8[4096]{0}', space=vmem, size = 0x1000, scoped, tag = 'input window, operand 1, single buffered']
    #allocation4 [shape = 's32[1]{0}', space=sflag, size = 0x4, scoped, tag = 'scoped memory for tpu_custom_call.1']
    #allocation5 [shape = 's32[1]{0}', space=sflag, size = 0x4, scoped, tag = 'scoped memory for tpu_custom_call.1']
    #allocation6 [shape = 'u8[4096]{0}', space=vmem, size = 0x1000, scoped, tag = 'input window, operand 2, single buffered']
    #allocation7 [shape = 's32[1]{0}', space=sflag, size = 0x4, scoped, tag = 'scoped memory for tpu_custom_call.1']
    #allocation8 [shape = 'u8[4096]{0}', space=vmem, size = 0x1000, scoped, tag = 'output window, operand 0, single buffered']
    %9 = vsyncpa [#allocation4], 0
    %10 = vsyncpa [#allocation7], 0
    %11 = vsyncpa [#allocation5], 0
    // Predicated region
    $region2: #{tpu_custom_call.1} parent=1 // pred_check
      _
    $region3: #{tpu_custom_call.1} parent=1 // pred_check_branch
      %13 = sbr.rel (0) target = $region5
    $region4: #{tpu_custom_call.1} parent=1 // pred_region
      _
    $region5: #{tpu_custom_call.1} parent=1 // pred_fallthru
      _
    // Predicated region
    $region6: #{tpu_custom_call.1} parent=1 // pred_check
      _
    $region7: #{tpu_custom_call.1} parent=1 // pred_check_branch
      %15 = sbr.rel (0) target = $region9
    $region8: #{tpu_custom_call.1} parent=1 // pred_region
      %s17 = ssub.s32 128, 128
      %18 = vsyncadd [#allocation4], %s17
      %s20 = sshll.u32 [#allocation3], 4
      %s21 = int_to_ptr.vmem [resolvable:$true] %s20
      %23 = dma.hbm_to_vmem [thread:$0]  %s1, 128, %s21, [#allocation4]
    $region9: #{tpu_custom_call.1} parent=1 // pred_fallthru
      _
    // Predicated region
    $region10: #{tpu_custom_call.1} parent=1 // pred_check
      _
    $region11: #{tpu_custom_call.1} parent=1 // pred_check_branch
      %25 = sbr.rel (0) target = $region13
    $region12: #{tpu_custom_call.1} parent=1 // pred_region
      %s27 = ssub.s32 128, 128
      %28 = vsyncadd [#allocation7], %s27
      %s30 = sshll.u32 [#allocation6], 4
      %s31 = int_to_ptr.vmem [resolvable:$true] %s30
      %33 = dma.hbm_to_vmem [thread:$0]  %s2, 128, %s31, [#allocation7]
    $region13: #{tpu_custom_call.1} parent=1 // pred_fallthru
      _
    // Predicated region
    $region14: #{tpu_custom_call.1} parent=1 // pred_check
      _
    $region15: #{tpu_custom_call.1} parent=1 // pred_check_branch
      %35 = sbr.rel (0) target = $region17
    $region16: #{tpu_custom_call.1} parent=1 // pred_region
      %36 = dma.done [#allocation4], 128
    $region17: #{tpu_custom_call.1} parent=1 // pred_fallthru
      _
    // Predicated region
    $region18: #{tpu_custom_call.1} parent=1 // pred_check
      _
    $region19: #{tpu_custom_call.1} parent=1 // pred_check_branch
      %38 = sbr.rel (0) target = $region21
    $region20: #{tpu_custom_call.1} parent=1 // pred_region
      %39 = dma.done [#allocation7], 128
    $region21: #{tpu_custom_call.1} parent=1 // pred_fallthru
      _
    %v40 = vld [vmem:[#allocation3] sm:$0xff]
    %v41 = vld [vmem:[#allocation6] sm:$0xff]
    %v42 = vadd.f32 %v40, %v41
    %43 = vst [vmem:[#allocation8] sm:$0xff] %v42
    // Predicated region
    $region22: #{tpu_custom_call.1} parent=1 // pred_check
      _
    $region23: #{tpu_custom_call.1} parent=1 // pred_check_branch
      %45 = sbr.rel (0) target = $region25
    $region24: #{tpu_custom_call.1} parent=1 // pred_region
      %s47 = ssub.s32 128, 128
      %48 = vsyncadd [#allocation5], %s47
      %s50 = sshll.u32 [#allocation8], 4
      %s51 = int_to_ptr.vmem [resolvable:$true] %s50
      %53 = dma.vmem_to_hbm [thread:$0]  %s51, 128, %s3, [#allocation5]
    $region25: #{tpu_custom_call.1} parent=1 // pred_fallthru
      _
    // Predicated region
    $region26: #{tpu_custom_call.1} parent=1 // pred_check
      _
    $region27: #{tpu_custom_call.1} parent=1 // pred_check_branch
      %55 = sbr.rel (0) target = $region29
    $region28: #{tpu_custom_call.1} parent=1 // pred_region
      %56 = dma.done [#allocation5], 128
    $region29: #{tpu_custom_call.1} parent=1 // pred_fallthru
      _
    %57 = vsyncpa [#allocation4], 1
    %58 = vsyncpa [#allocation7], 1
    %59 = vsyncpa [#allocation5], 1

</llo_original>
